<compile_context>
chip_gen: v7x
topology: tpu7x:2x2x1
jax: 0.10.0
libtpu: 0.0.40
codegen_flags: <defaults>
</compile_context>

<pallas_src>
import functools

import jax
import jax.numpy as jnp
from jax.experimental import pallas as pl
from jax.experimental.pallas import tpu as pltpu


_LANE = 128
# Per-tile budget measured in f32 working-set bytes (input tile promoted to
# f32 plus the exp temporary are the dominant live tensors Mosaic keeps).
_TARGET_TILE_F32_BYTES = 6 * 1024 * 1024
_VMEM_LIMIT_BYTES = 48 * 1024 * 1024   # explicit; fits v7x's 64 MiB physical


def _round_up(v, m):
    return -(-v // m) * m


def _softmax_kernel(x_ref, o_ref):
    """Numerically stable softmax over the last (lane) axis of one VMEM tile.

    Rows are independent, so garbage rows in a ragged (out-of-bounds) last
    block are harmless: Pallas drops their stores.
    """
    x = x_ref[...].astype(jnp.float32)
    m = jnp.max(x, axis=-1, keepdims=True)
    e = jnp.exp(x - m)
    s = jnp.sum(e, axis=-1, keepdims=True)
    # EUP approximate reciprocal keeps the VALU slot clear; one Newton step on
    # the tiny (tile_rows, 1) vector restores full f32 accuracy.
    r = pl.reciprocal(s, approx=True)
    r = r * (2.0 - s * r)
    o_ref[...] = (e * r).astype(o_ref.dtype)


@functools.partial(jax.jit, static_argnames=("shape",))
def distributed_softmax(x, shape):
    """x: (batch, rows, columns, indices); shape = (rows, columns, indices)."""
    rows, columns, indices = shape
    batch = x.shape[0]
    n = batch * rows * columns
    dtype = x.dtype
    itemsize = jnp.dtype(dtype).itemsize
    sublane = 16 if dtype == jnp.bfloat16 else 8  # bf16 packs 16 rows per vreg

    x2d = x.reshape(n, indices)  # contiguous: a no-copy reshape

    # --- Row tiling. Budget by the f32 working set (physical lane padding to
    # 128 included) so bf16 inputs don't silently blow past the VMEM limit via
    # their f32 intermediates.
    i_lanes = _round_up(indices, _LANE)
    per_block_f32_bytes = sublane * i_lanes * 4
    max_blocks_per_tile = max(1, _TARGET_TILE_F32_BYTES // per_block_f32_bytes)

    n_blocks = pl.cdiv(n, sublane)
    # At least 2 grid steps (megacore balance on v7x), nudged even when cheap.
    num_steps = max(2, pl.cdiv(n_blocks, max_blocks_per_tile))
    if num_steps % 2 == 1 and n_blocks >= num_steps + 1:
        num_steps += 1
    blocks_per_tile = pl.cdiv(n_blocks, num_steps)
    tile_rows = blocks_per_tile * sublane            # multiple of sublane
    grid = (pl.cdiv(n, tile_rows),)                  # ragged last block OK

    cost = pl.CostEstimate(
        flops=4 * n * indices,
        transcendentals=n * indices,
        bytes_accessed=2 * n * indices * itemsize,
    )

    out2d = pl.pallas_call(
        _softmax_kernel,
        out_shape=jax.ShapeDtypeStruct((n, indices), dtype),
        grid_spec=pltpu.PrefetchScalarGridSpec(
            num_scalar_prefetch=0,
            grid=grid,
            # Lane block dim == full `indices` extent (legal even when not a
            # multiple of 128); row dim is a sublane multiple.
            in_specs=[pl.BlockSpec((tile_rows, indices), lambda i: (i, 0))],
            out_specs=pl.BlockSpec((tile_rows, indices), lambda i: (i, 0)),
        ),
        compiler_params=pltpu.CompilerParams(
            dimension_semantics=("parallel",),
            vmem_limit_bytes=_VMEM_LIMIT_BYTES,
        ),
        cost_estimate=cost,
    )(x2d)

    return out2d.reshape(batch, rows * columns, indices)


def _reference(x, shape):
    rows, columns, indices = shape
    batch = x.shape[0]
    x2d = x.reshape(batch * rows * columns, indices).astype(jnp.float32)
    out = jax.nn.softmax(x2d, axis=-1)
    return out.reshape(batch, rows * columns, indices).astype(x.dtype)


if __name__ == "__main__":
    key = jax.random.PRNGKey(0)

    # Primary shape consistent with the module: batch=2, rows=4, columns=4, indices=128.
    batch, rows, columns, indices = 2, 4, 4, 128
    shape = (rows, columns, indices)
    x = jax.random.normal(key, (batch, rows, columns, indices), dtype=jnp.float32)

    out = distributed_softmax(x, shape)
    out = jax.block_until_ready(out)
    ref = _reference(x, shape)
    assert out.shape == (batch, rows * columns, indices), out.shape
    assert jnp.allclose(out, ref, atol=1e-5, rtol=1e-5), "mismatch vs reference (aligned)"

    # Secondary check exercising the ragged-row last block (n % 8 != 0) and a
    # lane extent that is not a multiple of 128 (masked stores, no host pads).
    batch2, rows2, columns2, indices2 = 3, 5, 3, 100
    shape2 = (rows2, columns2, indices2)
    key2 = jax.random.PRNGKey(0)
    x2 = jax.random.normal(key2, (batch2, rows2, columns2, indices2), dtype=jnp.float32)

    out2 = distributed_softmax(x2, shape2)
    out2 = jax.block_until_ready(out2)
    ref2 = _reference(x2, shape2)
    assert out2.shape == (batch2, rows2 * columns2, indices2), out2.shape
    assert jnp.allclose(out2, ref2, atol=1e-5, rtol=1e-5), "mismatch vs reference (ragged)"

    print("KERNEL_OK")
</pallas_src>

<mosaic_0001>
module attributes {stable_mosaic.version = 11 : i64} {
  func.func @_softmax_kernel(%arg0: i32, %arg1: memref<16x128xf32, #tpu.memory_space<vmem>>, %arg2: memref<16x128xf32, #tpu.memory_space<vmem>>) attributes {dimension_semantics = [#tpu.dimension_semantics<parallel>], iteration_bounds = array<i64: 2>, scalar_prefetch = 0 : i64, scratch_operands = 0 : i64, tpu.core_type = #tpu.core_type<tc>, window_params = [{transform_indices = @transform_0, window_bounds = array<i64: 16, 128>}, {transform_indices = @transform_1, window_bounds = array<i64: 16, 128>}]} {
    %c0 = arith.constant 0 : index
    %c0_0 = arith.constant 0 : index
    %0 = vector.load %arg1[%c0, %c0_0] : memref<16x128xf32, #tpu.memory_space<vmem>>, vector<16x128xf32>
    %cst = arith.constant dense<0xFF800000> : vector<16xf32>
    %1 = vector.multi_reduction <maximumf>, %0, %cst [1] : vector<16x128xf32> to vector<16xf32>
    %2 = vector.shape_cast %1 : vector<16xf32> to vector<16x1xf32>
    %3 = vector.broadcast %2 : vector<16x1xf32> to vector<16x128xf32>
    %4 = arith.subf %0, %3 : vector<16x128xf32>
    %5 = math.exp %4 : vector<16x128xf32>
    %cst_1 = arith.constant dense<0.000000e+00> : vector<16xf32>
    %6 = vector.multi_reduction <add>, %5, %cst_1 [1] : vector<16x128xf32> to vector<16xf32>
    %7 = vector.shape_cast %6 : vector<16xf32> to vector<16x1xf32>
    %8 = tpu.reciprocal %7 {approx = true} : vector<16x1xf32> -> vector<16x1xf32>
    %9 = arith.mulf %7, %8 : vector<16x1xf32>
    %cst_2 = arith.constant 2.000000e+00 : f32
    %10 = vector.broadcast %cst_2 : f32 to vector<16x1xf32>
    %11 = arith.subf %10, %9 : vector<16x1xf32>
    %12 = arith.mulf %8, %11 : vector<16x1xf32>
    %13 = vector.broadcast %12 : vector<16x1xf32> to vector<16x128xf32>
    %14 = arith.mulf %5, %13 : vector<16x128xf32>
    %c0_3 = arith.constant 0 : index
    %c0_4 = arith.constant 0 : index
    %15 = vector.load %arg2[%c0_3, %c0_4] : memref<16x128xf32, #tpu.memory_space<vmem>>, vector<16x128xf32>
    tpu.vector_store %arg2[%c0_3, %c0_4], %14 {strides = array<i32>} : memref<16x128xf32, #tpu.memory_space<vmem>>, vector<16x128xf32>,
    return
  }
  func.func @transform_0(%arg0: i32) -> (i32, i32) {
    %c0_i32 = arith.constant 0 : i32
    %c0_i32_0 = arith.constant 0 : i32
    return %arg0, %c0_i32 : i32, i32
  }
  func.func @transform_1(%arg0: i32) -> (i32, i32) {
    %c0_i32 = arith.constant 0 : i32
    %c0_i32_0 = arith.constant 0 : i32
    return %arg0, %c0_i32 : i32, i32
  }
}

</mosaic_0001>

<llo_original>
// kernel: distributed_softmax.1
$region0: #{distributed_softmax.1}
  #allocation0 [shape = 'u32[]', space=smem, size = 0x4, offset = 0x4, fixed_abs, tag = 'smem constant byte address 0x4 - core index']
  #allocation1 [shape = 'u32[144,128]{1,0:T(1,128)}', space=vmem, size = 0x12000, scoped, tag = 'internal scratch']
  %s0 = inlined_call_operand.hbm [shape: f32[32,128], index: 0, kind: input, shape index: {}]
  %s1 = inlined_call_operand.hbm [shape: f32[32,128], index: 1, kind: output, shape index: {}]
  %s2 = sld [smem:[#allocation0]]
  $region41: #{distributed_softmax.1} parent=0
    _
  %s4 = ssub.s32 1, %s2
  %s5 = scalar_select 0, %s4, %s2
  $region1: #{distributed_softmax.1} parent=0
    #allocation2 [shape = 'u8[16384]{0}', space=vmem, size = 0x4000, scoped, tag = 'input window, operand 0']
    #allocation3 [shape = 's32[2]{0}', space=sflag, size = 0x8, scoped, tag = 'scoped memory for distributed_softmax.1']
    #allocation4 [shape = 's32[2]{0}', space=sflag, size = 0x8, scoped, tag = 'scoped memory for distributed_softmax.1']
    #allocation5 [shape = 'u8[16384]{0}', space=vmem, size = 0x4000, scoped, tag = 'output window, operand 0']
    %6 = vsyncpa [#allocation3], 0
    %s7 = scalar_lea.sflag [#allocation3], 1
    %8 = vsyncpa %s7, 0
    %9 = vsyncpa [#allocation4], 0
    %s10 = scalar_lea.sflag [#allocation4], 1
    %11 = vsyncpa %s10, 0
    loop: start=0, step=1, limit=4
    $region2: #{distributed_softmax.1} parent=1 // loop_pre_header
      _
    $region3: #{distributed_softmax.1} parent=1 // loop_header
      %s13 = sphi 0, %s17
      %p14 = scmp.ge.s32.totalorder %s13, 4
      %s23 = sphi 0, %s25
      %s26 = sphi 0, %s23
      %s27 = sphi 0, %s26
      %s43 = sphi 0, %s27
      %s49 = sphi 0, %s51
      %s52 = sphi 0, %s49
      %s53 = sphi 0, %s52
      %s69 = sphi 0, %s53
    $region4: #{distributed_softmax.1} parent=1 // loop_header_branch
      %16 = sbr.rel (%p14) target = $region8
    $region5: #{distributed_softmax.1} parent=1 // loop_body
      %s18 = ssub.s32 %s13, 1
      %s19 = ssub.s32 %s13, 2
      %s20 = sadd.s32 %s13, 1
      %s21 = ssub.s32 %s13, %s20
      %p22 = scmp.eq.s32.totalorder %s21, 0
      %s24 = sadd.s32 %s23, 1
      %s25 = scalar_select %p22, %s23, %s24
      %p28 = pneg %p22
      %p29 = scmp.eq.s32.totalorder %s13, 1
      %p30 = por %p28, %p29
      %p31 = scmp.ne.s32.totalorder %s23, %s26
      %p32 = scmp.eq.s32.totalorder %s13, 0
      %p33 = por %p31, %p32
      %p34 = scmp.ne.s32.totalorder %s23, %s26
      %p35 = scmp.eq.s32.totalorder %s18, 1
      %p36 = por %p34, %p35
      %p37 = scmp.ne.s32.totalorder %s26, %s27
      %p38 = scmp.eq.s32.totalorder %s18, 0
      %p39 = por %p37, %p38
      %p40 = scmp.ne.s32.totalorder %s26, %s27
      %p41 = scmp.eq.s32.totalorder %s19, 1
      %p42 = por %p40, %p41
      %p44 = scmp.ne.s32.totalorder %s27, %s43
      %p45 = scmp.eq.s32.totalorder %s19, 0
      %p46 = por %p44, %p45
      %s47 = ssub.s32 %s13, %s20
      %p48 = scmp.eq.s32.totalorder %s47, 0
      %s50 = sadd.s32 %s49, 1
      %s51 = scalar_select %p48, %s49, %s50
      %p54 = pneg %p48
      %p55 = scmp.eq.s32.totalorder %s13, 1
      %p56 = por %p54, %p55
      %p57 = scmp.ne.s32.totalorder %s49, %s52
      %p58 = scmp.eq.s32.totalorder %s13, 0
      %p59 = por %p57, %p58
      %p60 = scmp.ne.s32.totalorder %s49, %s52
      %p61 = scmp.eq.s32.totalorder %s18, 1
      %p62 = por %p60, %p61
      %p63 = scmp.ne.s32.totalorder %s52, %s53
      %p64 = scmp.eq.s32.totalorder %s18, 0
      %p65 = por %p63, %p64
      %p66 = scmp.ne.s32.totalorder %s52, %s53
      %p67 = scmp.eq.s32.totalorder %s19, 1
      %p68 = por %p66, %p67
      %p70 = scmp.ne.s32.totalorder %s53, %s69
      %p71 = scmp.eq.s32.totalorder %s19, 0
      %p72 = por %p70, %p71
      %p73 = scmp.le.s32.totalorder 1, %s13
      %p74 = scmp.lt.s32.totalorder %s13, 3
      %p75 = pnand %p73, %p74
      %p76 = pneg %p75
      // Predicated region
      $region9: #{distributed_softmax.1} parent=5 // pred_check
        _
      $region10: #{distributed_softmax.1} parent=5 // pred_check_branch
        %78 = sbr.rel (%p75) target = $region12
      $region11: #{distributed_softmax.1} parent=5 // pred_region
        %s79 = ssub.s32 %s13, 1
      $region12: #{distributed_softmax.1} parent=5 // pred_fallthru
        _
      %p80 = scmp.lt.s32.totalorder %s13, 2
      // Predicated region
      $region13: #{distributed_softmax.1} parent=5 // pred_check
        %p81 = pneg %p80
      $region14: #{distributed_softmax.1} parent=5 // pred_check_branch
        %83 = sbr.rel (%p81) target = $region16
      $region15: #{distributed_softmax.1} parent=5 // pred_region
        // Predicated region
        $region17: #{distributed_softmax.1} parent=15 // pred_check
          %p84 = pneg %p33
        $region18: #{distributed_softmax.1} parent=15 // pred_check_branch
          %86 = sbr.rel (%p84) target = $region20
        $region19: #{distributed_softmax.1} parent=15 // pred_region
          %s87 = sand.u32 %s23, 1
          %s88 = scalar_lea.sflag [#allocation3], %s87
          %s89 = sand.u32 %s23, 1
          %s90 = smul.addr %s89, 16
          %s91 = scalar_lea.vmem [#allocation2], %s90
          %s92 = smul.u32 2, %s13
          %s94 = ssub.s32 256, 256
          %95 = vsyncadd %s88, %s94
          %s96 = smul.addr %s92, 128
          %s97 = scalar_lea.hbm %s0, %s96
          %s98 = sshll.u32 %s91, 4
          %s99 = int_to_ptr.vmem [resolvable:$true] %s98
          %104 = dma.hbm_to_vmem [thread:$0]  %s97, 256, %s99, %s88, 128, 128, 8
        $region20: #{distributed_softmax.1} parent=15 // pred_fallthru
          _
      $region16: #{distributed_softmax.1} parent=5 // pred_fallthru
        _
      %p105 = scmp.le.s32.totalorder 1, %s13
      %p106 = scmp.lt.s32.totalorder %s13, 3
      %p107 = pnand %p105, %p106
      %p108 = pneg %p107
      // Predicated region
      $region21: #{distributed_softmax.1} parent=5 // pred_check
        _
      $region22: #{distributed_softmax.1} parent=5 // pred_check_branch
        %110 = sbr.rel (%p107) target = $region24
      $region23: #{distributed_softmax.1} parent=5 // pred_region
        %s111 = ssub.s32 %s13, 1
        %s112 = sand.u32 %s26, 1
        %s113 = scalar_lea.sflag [#allocation3], %s112
        %s114 = sand.u32 %s26, 1
        %s115 = smul.addr %s114, 16
        %s116 = scalar_lea.vmem [#allocation2], %s115
        // Predicated region
        $region25: #{distributed_softmax.1} parent=23 // pred_check
          %p117 = pneg %p39
        $region26: #{distributed_softmax.1} parent=23 // pred_check_branch
          %119 = sbr.rel (%p117) target = $region28
        $region27: #{distributed_softmax.1} parent=23 // pred_region
          %120 = dma.done %s113, 256
        $region28: #{distributed_softmax.1} parent=23 // pred_fallthru
          _
        %s121 = sand.u32 %s26, 1
        %s122 = scalar_lea.sflag [#allocation3], %s121
        %s123 = sand.u32 %s26, 1
        %s124 = smul.addr %s123, 16
        %s125 = scalar_lea.vmem [#allocation2], %s124
        %p126 = pneg %p39
        %p127 = pneg %p36
        %p128 = pneg %p65
        %p129 = pneg %p62
        %s130 = sand.u32 %s52, 1
        %s131 = scalar_lea.sflag [#allocation4], %s130
        %s132 = sand.u32 %s52, 1
        %s133 = smul.addr %s132, 16
        %s134 = scalar_lea.vmem [#allocation5], %s133
        %s135 = smul.u32 2, %s18
        %s136 = smul.u32 2, %s18
        %v137 = vld [vmem:[%s116] sm:$0xff]
        %v138 = vld [vmem:[%s116 + $0x8] sm:$0xff]
        %139 = vmax.xlane.f32.xlu0 %v137
        %v140 = vpop.xlane.xlu0 %139
        %141 = vmax.xlane.f32.xlu0 %v138
        %v142 = vpop.xlane.xlu0 %141
        %v143 = vsub.f32 %v137, %v140
        %v144 = vsub.f32 %v138, %v142
        %v145 = vmul.f32 %v143, 1.442695
        %v146 = vpow.pop %v145
        %v147 = vmul.f32 %v144, 1.442695
        %v148 = vpow.pop %v147
        %149 = vadd.xlane.f32.xlu0 %v146
        %v150 = vpop.xlane.xlu0 %149
        %151 = vadd.xlane.f32.xlu0 %v148
        %v152 = vpop.xlane.xlu0 %151
        %v153 = vrcp.pop %v150
        %v154 = vrcp.pop %v152
        %v155 = vmul.f32 %v150, %v153
        %v156 = vmul.f32 %v152, %v154
        %v157 = vsub.f32 2.0, %v155
        %v158 = vsub.f32 2.0, %v156
        %v159 = vmul.f32 %v153, %v157
        %v160 = vmul.f32 %v154, %v158
        %v161 = vmul.f32 %v146, %v159
        %v162 = vmul.f32 %v148, %v160
        %163 = vst [vmem:[%s134] sm:$0xff] %v161
        %164 = vst [vmem:[%s134 + $0x8] sm:$0xff] %v162
        %s165 = sand.u32 %s52, 1
        %s166 = scalar_lea.sflag [#allocation4], %s165
        %s167 = sand.u32 %s52, 1
        %s168 = smul.addr %s167, 16
        %s169 = scalar_lea.vmem [#allocation5], %s168
        // Predicated region
        $region29: #{distributed_softmax.1} parent=23 // pred_check
          %p170 = pneg %p62
        $region30: #{distributed_softmax.1} parent=23 // pred_check_branch
          %172 = sbr.rel (%p170) target = $region32
        $region31: #{distributed_softmax.1} parent=23 // pred_region
          %s173 = smul.u32 2, %s18
          %s175 = ssub.s32 256, 256
          %176 = vsyncadd %s166, %s175
          %s177 = smul.addr %s173, 128
          %s178 = scalar_lea.hbm %s1, %s177
          %s179 = sshll.u32 %s169, 4
          %s180 = int_to_ptr.vmem [resolvable:$true] %s179
          %185 = dma.vmem_to_hbm [thread:$0]  %s180, 256, %s178, %s166, 128, 128, 8
        $region32: #{distributed_softmax.1} parent=23 // pred_fallthru
          _
      $region24: #{distributed_softmax.1} parent=5 // pred_fallthru
        _
      %p186 = scmp.le.s32.totalorder 2, %s13
      // Predicated region
      $region33: #{distributed_softmax.1} parent=5 // pred_check
        %p187 = pneg %p186
      $region34: #{distributed_softmax.1} parent=5 // pred_check_branch
        %189 = sbr.rel (%p187) target = $region36
      $region35: #{distributed_softmax.1} parent=5 // pred_region
        %s190 = ssub.s32 %s13, 2
        // Predicated region
        $region37: #{distributed_softmax.1} parent=35 // pred_check
          %p191 = pneg %p68
        $region38: #{distributed_softmax.1} parent=35 // pred_check_branch
          %193 = sbr.rel (%p191) target = $region40
        $region39: #{distributed_softmax.1} parent=35 // pred_region
          %s194 = sand.u32 %s53, 1
          %s195 = scalar_lea.sflag [#allocation4], %s194
          %s196 = sand.u32 %s53, 1
          %s197 = smul.addr %s196, 16
          %s198 = scalar_lea.vmem [#allocation5], %s197
          %199 = dma.done %s195, 256
        $region40: #{distributed_softmax.1} parent=35 // pred_fallthru
          _
      $region36: #{distributed_softmax.1} parent=5 // pred_fallthru
        _
    $region6: #{distributed_softmax.1} parent=1 // loop_footer
      %s17 = sadd.s32 1, %s13
    $region7: #{distributed_softmax.1} parent=1 // loop_footer_branch
      %12 = sbr.rel target = $region3
    $region8: #{distributed_softmax.1} parent=1 // loop_exit
      _
    %200 = vsyncpa [#allocation3], 1
    %s201 = scalar_lea.sflag [#allocation3], 1
    %202 = vsyncpa %s201, 1
    %203 = vsyncpa [#allocation4], 1
    %s204 = scalar_lea.sflag [#allocation4], 1
    %205 = vsyncpa %s204, 1

</llo_original>
